<compile_context>
chip_gen: v7x
topology: tpu7x:2x2x1
jax: 0.10.0
libtpu: 0.0.40
codegen_flags: <defaults>
</compile_context>

<pallas_src>
import functools

import jax
import jax.numpy as jnp
from jax.experimental import pallas as pl
from jax.experimental.pallas import tpu as pltpu


def _up_conv_kernel(x_ref, cmat_ref, o_ref):
    """One row strip of fused nearest-x2 upsample + 3x3 'same' conv + bias.

    x_ref    : (1, TM, 3*Kpad)  im2row'd, zero-padded ORIGINAL input rows
                               (+ constant-1 bias column in a spare lane)
    cmat_ref : (3*Kpad, Q)     folded band matrix (bias row included)
    o_ref    : (1, TM, Q)      Q = 2*Wo*Cout; o[m, p*Wo*Cout + x*Cout + co]
                               = out[co, 2*(m0+m)+p, x]
    """
    o_ref[0] = jnp.dot(
        x_ref[0], cmat_ref[...], preferred_element_type=jnp.float32
    ).astype(o_ref.dtype)


def _build_band_matrix(w_oihw, W):
    """Fold nearest-x2 (W dir), conv zero-pad and 3x3 taps into matmul weights.

    Cmat[d, c_col*Cin+ci, p*Wo*Cout + xo*Cout + co] =
        sum over (ky, kx) with (p+ky+1)//2 == d and (xo+kx+1)//2 == c_col
        of  w[co, ci, ky, kx]
    """
    Cout, Cin, KH, KW = w_oihw.shape
    Wo = 2 * W
    Q = 2 * Wo * Cout
    K = (W + 2) * Cin
    cmat = jnp.zeros((3, K, Q), dtype=jnp.float32)
    xo = jnp.arange(Wo)
    ci = jnp.arange(Cin)
    co = jnp.arange(Cout)
    for p in range(2):                         # output-row parity
        for ky in range(KH):
            d = (p + ky + 1) // 2              # which of the 3 padded-input rows
            for kx in range(KW):
                c_col = (xo + kx + 1) // 2     # padded-input column per output col
                rows = c_col[:, None, None] * Cin + ci[None, :, None]
                cols = p * Wo * Cout + xo[:, None, None] * Cout + co[None, None, :]
                rows_b = jnp.broadcast_to(rows, (Wo, Cin, Cout)).reshape(-1)
                cols_b = jnp.broadcast_to(cols, (Wo, Cin, Cout)).reshape(-1)
                vals = jnp.broadcast_to(
                    w_oihw[:, :, ky, kx].T[None, :, :].astype(jnp.float32),
                    (Wo, Cin, Cout)).reshape(-1)
                cmat = cmat.at[d, rows_b, cols_b].add(vals)   # colliding taps -> add
    return cmat


def upsample_conv_nhwc(x_nhwc, weight_oihw, bias, *, operand_dtype=jnp.bfloat16):
    """Fused nearest-x2 upsample + 3x3 conv (pad=1). NHWC in, NHWC out."""
    N, H, W, Cin = x_nhwc.shape
    Cout = weight_oihw.shape[0]
    Ho, Wo = 2 * H, 2 * W
    Q = 2 * Wo * Cout                       # lane-dense minor dim (256 here)
    Kdim = (W + 2) * Cin                    # 72 here
    # pad K to a 128 multiple, with >= 1 spare zero lane reserved for the bias column
    Kpad = ((Kdim + 1 + 127) // 128) * 128  # 128 here
    Kbig = 3 * Kpad                         # 384 here

    # pad only the SMALL pre-upsample input (the x2 upsample is folded into cmat)
    xp = jnp.pad(x_nhwc, ((0, 0), (1, 1), (1, 1), (0, 0))).reshape(N, H + 2, Kdim)
    xp = jnp.pad(xp, ((0, 0), (0, 0), (0, Kpad - Kdim)))          # lane-align K
    # im2row along H: 3 row-shifted copies on the K axis -> ONE matmul per strip,
    # all loads 8/128-aligned (no sublane-shifted slices inside the kernel)
    xrows = jnp.concatenate([xp[:, d:d + H, :] for d in range(3)], axis=-1)
    # constant-1 column in the spare zero lane of the d=0 block folds the bias in
    xrows = xrows.at[:, :, Kdim].set(1.0)
    xrows = xrows.astype(operand_dtype)

    cmat3 = _build_band_matrix(weight_oihw, W)                    # (3, Kdim, Q) f32
    cmat = jnp.zeros((Kbig, Q), dtype=jnp.float32)
    for d in range(3):
        cmat = cmat.at[d * Kpad:d * Kpad + Kdim, :].set(cmat3[d])
    cmat = cmat.at[Kdim, :].set(jnp.tile(bias.astype(jnp.float32), 2 * Wo))
    cmat = cmat.astype(operand_dtype)

    # Strip size: as big as comfortably fits VMEM (big M fills the MXU rows and
    # amortises per-grid-step overhead).  Whole image at these shapes.
    if H <= 256:
        TM = H
    else:
        TM = next(c for c in (256, 128, 64, 32, 16, 8, H) if H % c == 0)
    S = H // TM
    grid = (N, S)

    out2 = pl.pallas_call(
        _up_conv_kernel,
        out_shape=jax.ShapeDtypeStruct((N, H, Q), x_nhwc.dtype),
        grid=grid,
        in_specs=[
            pl.BlockSpec((1, TM, Kbig), lambda n, s: (n, s, 0)),
            # grid-invariant band matrix (constant block index -> fetched once)
            pl.BlockSpec((Kbig, Q), lambda n, s: (0, 0)),
        ],
        out_specs=pl.BlockSpec((1, TM, Q), lambda n, s: (n, s, 0)),
        compiler_params=pltpu.CompilerParams(
            # both axes independent -> shard across v7x's 2 TensorCores
            dimension_semantics=("parallel", "parallel"),
            # explicit, generation-safe scoped-VMEM budget (footprint here ~1 MiB)
            vmem_limit_bytes=32 * 1024 * 1024),
    )(xrows, cmat)

    # (N, H, 2*Wo*Cout) -> (N, H, 2, Wo, Cout) -> (N, 2H, Wo, Cout)   (metadata only)
    return out2.reshape(N, H, 2, Wo, Cout).reshape(N, Ho, Wo, Cout)


@functools.partial(jax.jit, static_argnames=("use_conv",))
def upsample_forward(x_nchw, weight_oihw=None, bias=None, *, use_conv=True):
    """JAX/Pallas equivalent of Upsample.forward for dims=2 (NCHW in/out, PyTorch parity)."""
    if not use_conv:
        # plain nearest-x2: pure index duplication, no compute -> JAX glue
        return jnp.repeat(jnp.repeat(x_nchw, 2, axis=2), 2, axis=3)
    # Boundary layout change only; in an NHWC model call upsample_conv_nhwc
    # directly to avoid the (4x larger) output-side transpose.
    x_nhwc = jnp.transpose(x_nchw, (0, 2, 3, 1))
    out_nhwc = upsample_conv_nhwc(x_nhwc, weight_oihw, bias)
    return jnp.transpose(out_nhwc, (0, 3, 1, 2))


def _reference_forward(x_nchw, weight_oihw, bias):
    """Pure-JAX reference mirroring the PyTorch module (for self-check)."""
    x_up = jnp.repeat(jnp.repeat(x_nchw, 2, axis=2), 2, axis=3)
    y = jax.lax.conv_general_dilated(
        x_up, weight_oihw, window_strides=(1, 1), padding=((1, 1), (1, 1)),
        dimension_numbers=("NCHW", "OIHW", "NCHW"),
        precision=jax.lax.Precision.HIGHEST)
    return y + bias.reshape(1, -1, 1, 1)


if __name__ == "__main__":
    # Upsample(channels=4, use_conv=True, dims=2, out_channels=4)
    channels, out_channels = 4, 4
    N, H, W = 2, 16, 16

    key = jax.random.PRNGKey(0)
    kx, kw, kb = jax.random.split(key, 3)
    x = jax.random.normal(kx, (N, channels, H, W), dtype=jnp.float32)
    # deterministic synthetic params for nn.Conv2d(channels, out_channels, 3, padding=1)
    weight = 0.1 * jax.random.normal(kw, (out_channels, channels, 3, 3), dtype=jnp.float32)
    bias = 0.1 * jax.random.normal(kb, (out_channels,), dtype=jnp.float32)

    y = upsample_forward(x, weight, bias, use_conv=True)
    y = jax.block_until_ready(y)

    y_ref = _reference_forward(x, weight, bias)
    assert y.shape == (N, out_channels, 2 * H, 2 * W), y.shape
    max_err = float(jnp.max(jnp.abs(y - y_ref)))
    # bf16 MXU operands (f32 accumulate) -> slightly looser tolerance than f32.
    assert jnp.allclose(y, y_ref, rtol=2e-2, atol=2e-2), f"max abs err {max_err}"

    print("KERNEL_OK")
</pallas_src>

<mosaic_0001>
module attributes {stable_mosaic.version = 11 : i64} {
  func.func private @main(%arg0: i32) attributes {dimension_semantics = [#tpu.dimension_semantics<core_parallel>], iteration_bounds = array<i64: 2>, tpu.core_type = #tpu.core_type<sc_scalar_subcore>, window_params = []} {
    return
  }
}

module attributes {stable_mosaic.version = 11 : i64} {
  func.func private @main(%arg0: i32) attributes {dimension_semantics = [#tpu.dimension_semantics<core_parallel>], iteration_bounds = array<i64: 2>, tpu.core_type = #tpu.core_type<sc_scalar_subcore>, window_params = []} {
    return
  }
}

module attributes {stable_mosaic.version = 11 : i64} {
  func.func @_up_conv_kernel(%arg0: i32, %arg1: i32, %arg2: memref<1x16x384xbf16, #tpu.memory_space<vmem>>, %arg3: memref<384x256xbf16, #tpu.memory_space<vmem>>, %arg4: memref<1x16x256xf32, #tpu.memory_space<vmem>>) attributes {dimension_semantics = [#tpu.dimension_semantics<parallel>, #tpu.dimension_semantics<parallel>], iteration_bounds = array<i64: 2, 1>, scalar_prefetch = 0 : i64, scratch_operands = 0 : i64, tpu.core_type = #tpu.core_type<tc>, window_params = [{transform_indices = @transform_0, window_bounds = array<i64: 1, 16, 384>}, {pipeline_mode = #tpu.pipeline_mode<synchronous>, transform_indices = @transform_1, window_bounds = array<i64: 384, 256>}, {transform_indices = @transform_2, window_bounds = array<i64: 1, 16, 256>}]} {
    %c0 = arith.constant 0 : index
    %c0_0 = arith.constant 0 : index
    %c0_1 = arith.constant 0 : index
    %0 = vector.load %arg2[%c0, %c0_0, %c0_1] : memref<1x16x384xbf16, #tpu.memory_space<vmem>>, vector<1x16x384xbf16>
    %1 = vector.shape_cast %0 : vector<1x16x384xbf16> to vector<16x384xbf16>
    %c0_2 = arith.constant 0 : index
    %c0_3 = arith.constant 0 : index
    %2 = vector.load %arg3[%c0_2, %c0_3] : memref<384x256xbf16, #tpu.memory_space<vmem>>, vector<384x256xbf16>
    %cst = arith.constant dense<0.000000e+00> : vector<16x256xf32>
    %3 = tpu.matmul %1, %2, %cst {dimension_numbers = #tpu.dot_dimension_numbers<[1], [0], [0], [1], [0, 0, 1, 1], [], []>} : vector<16x384xbf16>, vector<384x256xbf16>, vector<16x256xf32> -> vector<16x256xf32>
    %c0_4 = arith.constant 0 : index
    %c0_5 = arith.constant 0 : index
    %c0_6 = arith.constant 0 : index
    %4 = vector.load %arg4[%c0_4, %c0_5, %c0_6] : memref<1x16x256xf32, #tpu.memory_space<vmem>>, vector<1x16x256xf32>
    %5 = vector.shape_cast %4 : vector<1x16x256xf32> to vector<16x256xf32>
    %6 = vector.shape_cast %3 : vector<16x256xf32> to vector<1x16x256xf32>
    tpu.vector_store %arg4[%c0_4, %c0_5, %c0_6], %6 {strides = array<i32>} : memref<1x16x256xf32, #tpu.memory_space<vmem>>, vector<1x16x256xf32>,
    return
  }
  func.func @transform_0(%arg0: i32, %arg1: i32) -> (i32, i32, i32) {
    %c0_i32 = arith.constant 0 : i32
    %c0_i32_0 = arith.constant 0 : i32
    return %arg0, %arg1, %c0_i32 : i32, i32, i32
  }
  func.func @transform_1(%arg0: i32, %arg1: i32) -> (i32, i32) {
    %c0_i32 = arith.constant 0 : i32
    %c0_i32_0 = arith.constant 0 : i32
    %c0_i32_1 = arith.constant 0 : i32
    return %c0_i32, %c0_i32_0 : i32, i32
  }
  func.func @transform_2(%arg0: i32, %arg1: i32) -> (i32, i32, i32) {
    %c0_i32 = arith.constant 0 : i32
    %c0_i32_0 = arith.constant 0 : i32
    return %arg0, %arg1, %c0_i32 : i32, i32, i32
  }
}

</mosaic_0001>

<llo_original>
// kernel: tile.8
$region0: #{tile.8}
  #allocation0 [shape = 's32[1]{0}', space=sflag, size = 0x4, scoped, tag = 'scoped memory for tile.8']
  %s0 = inlined_call_operand.vmem [shape: f32[4], index: 0, kind: input, shape index: {}]
  %s1 = inlined_call_operand.vmem [shape: bf16[64,4], index: 1, kind: output, shape index: {}]
  // Predicated region
  $region2: #{tile.8} parent=0 // pred_check
    _
  $region3: #{tile.8} parent=0 // pred_check_branch
    %3 = sbr.rel (0) target = $region5
  $region4: #{tile.8} parent=0 // pred_region
    _
  $region5: #{tile.8} parent=0 // pred_fallthru
    _
  %v4 = vld [vmem:[%s0] ss:$0 sm:$0xff]
  %v5 = vpack.c.bf16 0.0, %v4
  %6 = vst [vmem:[%s1] sm:$0xf] %v5
  %s7 = scalar_lea.vmem %s1, 4
  %v8 = vpack.c.bf16 0.0, %v4
  %9 = vst [vmem:[%s7] sm:$0xf] %v8
  %s10 = scalar_lea.vmem %s1, 8
  %v11 = vpack.c.bf16 0.0, %v4
  %12 = vst [vmem:[%s10] sm:$0xf] %v11
  %s13 = scalar_lea.vmem %s1, 12
  %v14 = vpack.c.bf16 0.0, %v4
  %15 = vst [vmem:[%s13] sm:$0xf] %v14
  %s16 = scalar_lea.vmem %s1, 16
  %v17 = vpack.c.bf16 0.0, %v4
  %18 = vst [vmem:[%s16] sm:$0xf] %v17
  %s19 = scalar_lea.vmem %s1, 20
  %v20 = vpack.c.bf16 0.0, %v4
  %21 = vst [vmem:[%s19] sm:$0xf] %v20
  %s22 = scalar_lea.vmem %s1, 24
  %v23 = vpack.c.bf16 0.0, %v4
  %24 = vst [vmem:[%s22] sm:$0xf] %v23
  %s25 = scalar_lea.vmem %s1, 28
  %v26 = vpack.c.bf16 0.0, %v4
  %27 = vst [vmem:[%s25] sm:$0xf] %v26

// kernel: upsample_forward.1
$region0: #{upsample_forward.1}
  #allocation0 [shape = 'u32[]', space=smem, size = 0x4, offset = 0x4, fixed_abs, tag = 'smem constant byte address 0x4 - core index']
  #allocation1 [shape = 'u32[144,128]{1,0:T(1,128)}', space=vmem, size = 0x12000, scoped, tag = 'internal scratch']
  %s0 = inlined_call_operand.vmem [shape: bf16[2,16,384], index: 0, kind: input, shape index: {}]
  %s1 = inlined_call_operand.vmem [shape: bf16[384,256], index: 1, kind: input, shape index: {}]
  %s2 = inlined_call_operand.vmem [shape: f32[2,16,256], index: 2, kind: output, shape index: {}]
  %s3 = sld [smem:[#allocation0]]
  $region41: #{upsample_forward.1} parent=0
    _
  %s5 = ssub.s32 1, %s3
  %s6 = scalar_select 0, %s5, %s3
  loop: start=0, step=1, limit=4
  $region2: #{upsample_forward.1} parent=0 // loop_pre_header
    _
  $region3: #{upsample_forward.1} parent=0 // loop_header
    %s8 = sphi 0, %s12
    %p9 = scmp.ge.s32.totalorder %s8, 4
    %s15 = sphi 0, %s27
    %s16 = sphi 0, %s23
    %s17 = sphi 0, %s15
    %s18 = sphi 0, %s16
    %s19 = sphi 0, %s17
    %s20 = sphi 0, %s18
    %s32 = sphi 0, %s34
    %s35 = sphi 0, %s32
    %s36 = sphi 0, %s35
    %s52 = sphi 0, %s36
    %s56 = sphi 0, %s56
    %s58 = sphi 0, %s56
    %s59 = sphi 0, %s58
    %s73 = sphi 0, %s59
    %s81 = sphi 0, %s83
    %s84 = sphi 0, %s81
    %s85 = sphi 0, %s84
    %s101 = sphi 0, %s85
  $region4: #{upsample_forward.1} parent=0 // loop_header_branch
    %11 = sbr.rel (%p9) target = $region8
  $region5: #{upsample_forward.1} parent=0 // loop_body
    %s13 = ssub.s32 %s8, 1
    %s14 = ssub.s32 %s8, 2
    %s21 = sadd.s32 1, %s16
    %p22 = scmp.ge.s32.totalorder %s21, 1
    %s23 = scalar_select %p22, 0, %s21
    %s24 = sadd.s32 1, %s15
    %s25 = scalar_select %p22, %s24, %s15
    %p26 = scmp.ge.s32.totalorder %s25, 2
    %s27 = scalar_select %p26, 0, %s25
    %s28 = ssub.s32 %s15, %s27
    %s29 = ssub.s32 %s16, %s23
    %s30 = sor.u32 %s28, %s29
    %p31 = scmp.eq.s32.totalorder %s30, 0
    %s33 = sadd.s32 %s32, 1
    %s34 = scalar_select %p31, %s32, %s33
    %p37 = pneg %p31
    %p38 = scmp.eq.s32.totalorder %s8, 1
    %p39 = por %p37, %p38
    %p40 = scmp.ne.s32.totalorder %s32, %s35
    %p41 = scmp.eq.s32.totalorder %s8, 0
    %p42 = por %p40, %p41
    %p43 = scmp.ne.s32.totalorder %s32, %s35
    %p44 = scmp.eq.s32.totalorder %s13, 1
    %p45 = por %p43, %p44
    %p46 = scmp.ne.s32.totalorder %s35, %s36
    %p47 = scmp.eq.s32.totalorder %s13, 0
    %p48 = por %p46, %p47
    %p49 = scmp.ne.s32.totalorder %s35, %s36
    %p50 = scmp.eq.s32.totalorder %s14, 1
    %p51 = por %p49, %p50
    %p53 = scmp.ne.s32.totalorder %s36, %s52
    %p54 = scmp.eq.s32.totalorder %s14, 0
    %p55 = por %p53, %p54
    %s57 = sadd.s32 %s56, 1
    %p60 = scmp.eq.s32.totalorder %s8, 1
    %p61 = scmp.ne.s32.totalorder %s56, %s58
    %p62 = scmp.eq.s32.totalorder %s8, 0
    %p63 = por %p61, %p62
    %p64 = scmp.ne.s32.totalorder %s56, %s58
    %p65 = scmp.eq.s32.totalorder %s13, 1
    %p66 = por %p64, %p65
    %p67 = scmp.ne.s32.totalorder %s58, %s59
    %p68 = scmp.eq.s32.totalorder %s13, 0
    %p69 = por %p67, %p68
    %p70 = scmp.ne.s32.totalorder %s58, %s59
    %p71 = scmp.eq.s32.totalorder %s14, 1
    %p72 = por %p70, %p71
    %p74 = scmp.ne.s32.totalorder %s59, %s73
    %p75 = scmp.eq.s32.totalorder %s14, 0
    %p76 = por %p74, %p75
    %s77 = ssub.s32 %s15, %s27
    %s78 = ssub.s32 %s16, %s23
    %s79 = sor.u32 %s77, %s78
    %p80 = scmp.eq.s32.totalorder %s79, 0
    %s82 = sadd.s32 %s81, 1
    %s83 = scalar_select %p80, %s81, %s82
    %p86 = pneg %p80
    %p87 = scmp.eq.s32.totalorder %s8, 1
    %p88 = por %p86, %p87
    %p89 = scmp.ne.s32.totalorder %s81, %s84
    %p90 = scmp.eq.s32.totalorder %s8, 0
    %p91 = por %p89, %p90
    %p92 = scmp.ne.s32.totalorder %s81, %s84
    %p93 = scmp.eq.s32.totalorder %s13, 1
    %p94 = por %p92, %p93
    %p95 = scmp.ne.s32.totalorder %s84, %s85
    %p96 = scmp.eq.s32.totalorder %s13, 0
    %p97 = por %p95, %p96
    %p98 = scmp.ne.s32.totalorder %s84, %s85
    %p99 = scmp.eq.s32.totalorder %s14, 1
    %p100 = por %p98, %p99
    %p102 = scmp.ne.s32.totalorder %s85, %s101
    %p103 = scmp.eq.s32.totalorder %s14, 0
    %p104 = por %p102, %p103
    %p105 = scmp.le.s32.totalorder 1, %s8
    %p106 = scmp.lt.s32.totalorder %s8, 3
    %p107 = pnand %p105, %p106
    %p108 = pneg %p107
    // Predicated region
    $region9: #{upsample_forward.1} parent=5 // pred_check
      _
    $region10: #{upsample_forward.1} parent=5 // pred_check_branch
      %110 = sbr.rel (%p107) target = $region12
    $region11: #{upsample_forward.1} parent=5 // pred_region
      %s111 = ssub.s32 %s8, 1
      // Predicated region
      $region13: #{upsample_forward.1} parent=11 // pred_check
        %p112 = pneg %p69
      $region14: #{upsample_forward.1} parent=11 // pred_check_branch
        %114 = sbr.rel (%p112) target = $region16
      $region15: #{upsample_forward.1} parent=11 // pred_region
        _
      $region16: #{upsample_forward.1} parent=11 // pred_fallthru
        _
    $region12: #{upsample_forward.1} parent=5 // pred_fallthru
      _
    %p115 = scmp.lt.s32.totalorder %s8, 2
    // Predicated region
    $region17: #{upsample_forward.1} parent=5 // pred_check
      %p116 = pneg %p115
    $region18: #{upsample_forward.1} parent=5 // pred_check_branch
      %118 = sbr.rel (%p116) target = $region20
    $region19: #{upsample_forward.1} parent=5 // pred_region
      // Predicated region
      $region21: #{upsample_forward.1} parent=19 // pred_check
        %p119 = pneg %p42
      $region22: #{upsample_forward.1} parent=19 // pred_check_branch
        %121 = sbr.rel (%p119) target = $region24
      $region23: #{upsample_forward.1} parent=19 // pred_region
        %s122 = smul.u32 2, %s16
        %p123 = scmp.lt.s32.totalorder %s15, 1
        %s124 = scalar_select %p123, %s15, 1
        %p125 = scmp.lt.s32.totalorder %s122, 1
        %s126 = scalar_select %p125, %s122, 1
        %s127 = smul.addr %s126, 3
        %s128 = smul.addr %s124, 6
        %s129 = sadd.s32 %s127, %s128
        %s130 = smul.addr %s129, 4
        %s131 = scalar_lea.vmem %s0, %s130
        %s132 = smul.u32 2, %s16
      $region24: #{upsample_forward.1} parent=19 // pred_fallthru
        _
    $region20: #{upsample_forward.1} parent=5 // pred_fallthru
      _
    %p133 = scmp.le.s32.totalorder 1, %s8
    %p134 = scmp.lt.s32.totalorder %s8, 3
    %p135 = pnand %p133, %p134
    %p136 = pneg %p135
    // Predicated region
    $region25: #{upsample_forward.1} parent=5 // pred_check
      _
    $region26: #{upsample_forward.1} parent=5 // pred_check_branch
      %138 = sbr.rel (%p135) target = $region28
    $region27: #{upsample_forward.1} parent=5 // pred_region
      %s139 = ssub.s32 %s8, 1
      %s140 = smul.u32 2, %s18
      %p141 = scmp.lt.s32.totalorder %s17, 1
      %s142 = scalar_select %p141, %s17, 1
      %p143 = scmp.lt.s32.totalorder %s140, 1
      %s144 = scalar_select %p143, %s140, 1
      %s145 = smul.addr %s144, 3
      %s146 = smul.addr %s142, 6
      %s147 = sadd.s32 %s145, %s146
      %s148 = smul.addr %s147, 4
      %s149 = scalar_lea.vmem %s0, %s148
      %p150 = pneg %p48
      %p151 = pneg %p45
      %p152 = pneg %p69
      %p153 = pneg %p66
      %p154 = pneg %p97
      %p155 = pneg %p94
      %s156 = smul.u32 2, %s18
      %p157 = scmp.lt.s32.totalorder %s17, 1
      %s158 = scalar_select %p157, %s17, 1
      %p159 = scmp.lt.s32.totalorder %s156, 1
      %s160 = scalar_select %p159, %s156, 1
      %s161 = smul.addr %s160, 2
      %s162 = smul.addr %s158, 4
      %s163 = sadd.s32 %s161, %s162
      %s164 = smul.addr %s163, 8
      %s165 = scalar_lea.vmem %s2, %s164
      %s166 = smul.u32 2, %s18
      %p167 = scmp.lt.s32.totalorder %s17, 1
      %s168 = scalar_select %p167, %s17, 1
      %p169 = scmp.lt.s32.totalorder %s166, 1
      %s170 = scalar_select %p169, %s166, 1
      %s171 = smul.addr %s170, 3
      %s172 = smul.addr %s168, 6
      %s173 = sadd.s32 %s171, %s172
      %s174 = smul.addr %s173, 4
      %s175 = scalar_lea.vmem %s0, %s174
      %s176 = smul.u32 2, %s18
      %s177 = smul.u32 2, %s18
      %p178 = scmp.lt.s32.totalorder %s17, 1
      %s179 = scalar_select %p178, %s17, 1
      %p180 = scmp.lt.s32.totalorder %s177, 1
      %s181 = scalar_select %p180, %s177, 1
      %s182 = smul.addr %s181, 2
      %s183 = smul.addr %s179, 4
      %s184 = sadd.s32 %s182, %s183
      %s185 = smul.addr %s184, 8
      %s186 = scalar_lea.vmem %s2, %s185
      %s187 = smul.u32 2, %s18
      %v189 = vld [vmem:[%s175] sm:$0xff]
      %v190 = vld [vmem:[%s175 + $0x8] sm:$0xf]
      %v191 = vld [vmem:[%s175 + $0xc] sm:$0xff]
      %v192 = vld [vmem:[%s175 + $0x14] sm:$0xf]
      %v193 = vld [vmem:[%s1] sm:$0xff]
      %v194 = vld [vmem:[%s1 + $0x8] sm:$0xff]
      %v195 = vld [vmem:[%s1 + $0x10] sm:$0xff]
      %v196 = vld [vmem:[%s1 + $0x18] sm:$0xff]
      %v197 = vld [vmem:[%s1 + $0x20] sm:$0xff]
      %v198 = vld [vmem:[%s1 + $0x28] sm:$0xff]
      %v199 = vld [vmem:[%s1 + $0x30] sm:$0xff]
      %v200 = vld [vmem:[%s1 + $0x38] sm:$0xff]
      %v201 = vld [vmem:[%s1 + $0x40] sm:$0xff]
      %v202 = vld [vmem:[%s1 + $0x48] sm:$0xff]
      %v203 = vld [vmem:[%s1 + $0x50] sm:$0xff]
      %v204 = vld [vmem:[%s1 + $0x58] sm:$0xff]
      %v205 = vld [vmem:[%s1 + $0x60] sm:$0xff]
      %v206 = vld [vmem:[%s1 + $0x68] sm:$0xff]
      %v207 = vld [vmem:[%s1 + $0x70] sm:$0xff]
      %v208 = vld [vmem:[%s1 + $0x78] sm:$0xff]
      %v209 = vld [vmem:[%s1 + $0x80] sm:$0xff]
      %v210 = vld [vmem:[%s1 + $0x88] sm:$0xff]
      %v211 = vld [vmem:[%s1 + $0x90] sm:$0xff]
      %v212 = vld [vmem:[%s1 + $0x98] sm:$0xff]
      %v213 = vld [vmem:[%s1 + $0xa0] sm:$0xff]
      %v214 = vld [vmem:[%s1 + $0xa8] sm:$0xff]
      %v215 = vld [vmem:[%s1 + $0xb0] sm:$0xff]
      %v216 = vld [vmem:[%s1 + $0xb8] sm:$0xff]
      %v217 = vld [vmem:[%s1 + $0xc0] sm:$0xff]
      %v218 = vld [vmem:[%s1 + $0xc8] sm:$0xff]
      %v219 = vld [vmem:[%s1 + $0xd0] sm:$0xff]
      %v220 = vld [vmem:[%s1 + $0xd8] sm:$0xff]
      %v221 = vld [vmem:[%s1 + $0xe0] sm:$0xff]
      %v222 = vld [vmem:[%s1 + $0xe8] sm:$0xff]
      %v223 = vld [vmem:[%s1 + $0xf0] sm:$0xff]
      %v224 = vld [vmem:[%s1 + $0xf8] sm:$0xff]
      %v225 = vld [vmem:[%s1 + $0x100] sm:$0xff]
      %v226 = vld [vmem:[%s1 + $0x108] sm:$0xff]
      %v227 = vld [vmem:[%s1 + $0x110] sm:$0xff]
      %v228 = vld [vmem:[%s1 + $0x118] sm:$0xff]
      %v229 = vld [vmem:[%s1 + $0x120] sm:$0xff]
      %v230 = vld [vmem:[%s1 + $0x128] sm:$0xff]
      %v231 = vld [vmem:[%s1 + $0x130] sm:$0xff]
      %v232 = vld [vmem:[%s1 + $0x138] sm:$0xff]
      %v233 = vld [vmem:[%s1 + $0x140] sm:$0xff]
      %v234 = vld [vmem:[%s1 + $0x148] sm:$0xff]
      %v235 = vld [vmem:[%s1 + $0x150] sm:$0xff]
      %v236 = vld [vmem:[%s1 + $0x158] sm:$0xff]
      %v237 = vld [vmem:[%s1 + $0x160] sm:$0xff]
      %v238 = vld [vmem:[%s1 + $0x168] sm:$0xff]
      %v239 = vld [vmem:[%s1 + $0x170] sm:$0xff]
      %v240 = vld [vmem:[%s1 + $0x178] sm:$0xff]
      %v245 = vunpack.c.l.b16 %v189
      %v246 = vunpack.c.h.b16 %v189
      %v247 = vunpack.c.l.b16 %v190
      %v248 = vunpack.c.l.b16 %v191
      %v249 = vunpack.c.h.b16 %v191
      %v250 = vunpack.c.l.b16 %v192
      %v251 = vpack.c.b16 %v248, %v245
      %v252 = vpack.c.b16 %v249, %v246
      %v253 = vpack.c.b16 %v250, %v247
      %v305 = vunpack.c.l.b16 %v193
      %v306 = vunpack.c.h.b16 %v193
      %v307 = vunpack.c.l.b16 %v194
      %v308 = vunpack.c.h.b16 %v194
      %v309 = vunpack.c.l.b16 %v195
      %v310 = vunpack.c.h.b16 %v195
      %v311 = vunpack.c.l.b16 %v196
      %v312 = vunpack.c.h.b16 %v196
      %v313 = vunpack.c.l.b16 %v197
      %v314 = vunpack.c.h.b16 %v197
      %v315 = vunpack.c.l.b16 %v198
      %v316 = vunpack.c.h.b16 %v198
      %v317 = vunpack.c.l.b16 %v199
      %v318 = vunpack.c.h.b16 %v199
      %v319 = vunpack.c.l.b16 %v200
      %v320 = vunpack.c.h.b16 %v200
      %v321 = vunpack.c.l.b16 %v201
      %v322 = vunpack.c.h.b16 %v201
      %v323 = vunpack.c.l.b16 %v202
      %v324 = vunpack.c.h.b16 %v202
      %v325 = vunpack.c.l.b16 %v203
      %v326 = vunpack.c.h.b16 %v203
      %v327 = vunpack.c.l.b16 %v204
      %v328 = vunpack.c.h.b16 %v204
      %v329 = vunpack.c.l.b16 %v205
      %v330 = vunpack.c.h.b16 %v205
      %v331 = vunpack.c.l.b16 %v206
      %v332 = vunpack.c.h.b16 %v206
      %v333 = vunpack.c.l.b16 %v207
      %v334 = vunpack.c.h.b16 %v207
      %v335 = vunpack.c.l.b16 %v208
      %v336 = vunpack.c.h.b16 %v208
      %v337 = vunpack.c.l.b16 %v209
      %v338 = vunpack.c.h.b16 %v209
      %v339 = vunpack.c.l.b16 %v210
      %v340 = vunpack.c.h.b16 %v210
      %v341 = vunpack.c.l.b16 %v211
      %v342 = vunpack.c.h.b16 %v211
      %v343 = vunpack.c.l.b16 %v212
      %v344 = vunpack.c.h.b16 %v212
      %v345 = vunpack.c.l.b16 %v213
      %v346 = vunpack.c.h.b16 %v213
      %v347 = vunpack.c.l.b16 %v214
      %v348 = vunpack.c.h.b16 %v214
      %v349 = vunpack.c.l.b16 %v215
      %v350 = vunpack.c.h.b16 %v215
      %v351 = vunpack.c.l.b16 %v216
      %v352 = vunpack.c.h.b16 %v216
      %v353 = vunpack.c.l.b16 %v217
      %v354 = vunpack.c.h.b16 %v217
      %v355 = vunpack.c.l.b16 %v218
      %v356 = vunpack.c.h.b16 %v218
      %v357 = vunpack.c.l.b16 %v219
      %v358 = vunpack.c.h.b16 %v219
      %v359 = vunpack.c.l.b16 %v220
      %v360 = vunpack.c.h.b16 %v220
      %v361 = vunpack.c.l.b16 %v221
      %v362 = vunpack.c.h.b16 %v221
      %v363 = vunpack.c.l.b16 %v222
      %v364 = vunpack.c.h.b16 %v222
      %v365 = vunpack.c.l.b16 %v223
      %v366 = vunpack.c.h.b16 %v223
      %v367 = vunpack.c.l.b16 %v224
      %v368 = vunpack.c.h.b16 %v224
      %v369 = vunpack.c.l.b16 %v225
      %v370 = vunpack.c.h.b16 %v225
      %v371 = vunpack.c.l.b16 %v226
      %v372 = vunpack.c.h.b16 %v226
      %v373 = vunpack.c.l.b16 %v227
      %v374 = vunpack.c.h.b16 %v227
      %v375 = vunpack.c.l.b16 %v228
      %v376 = vunpack.c.h.b16 %v228
      %v377 = vunpack.c.l.b16 %v229
      %v378 = vunpack.c.h.b16 %v229
      %v379 = vunpack.c.l.b16 %v230
      %v380 = vunpack.c.h.b16 %v230
      %v381 = vunpack.c.l.b16 %v231
      %v382 = vunpack.c.h.b16 %v231
      %v383 = vunpack.c.l.b16 %v232
      %v384 = vunpack.c.h.b16 %v232
      %v385 = vunpack.c.l.b16 %v233
      %v386 = vunpack.c.h.b16 %v233
      %v387 = vunpack.c.l.b16 %v234
      %v388 = vunpack.c.h.b16 %v234
      %v389 = vunpack.c.l.b16 %v235
      %v390 = vunpack.c.h.b16 %v235
      %v391 = vunpack.c.l.b16 %v236
      %v392 = vunpack.c.h.b16 %v236
      %v393 = vunpack.c.l.b16 %v237
      %v394 = vunpack.c.h.b16 %v237
      %v395 = vunpack.c.l.b16 %v238
      %v396 = vunpack.c.h.b16 %v238
      %v397 = vunpack.c.l.b16 %v239
      %v398 = vunpack.c.h.b16 %v239
      %v399 = vunpack.c.l.b16 %v240
      %v400 = vunpack.c.h.b16 %v240
      %v401 = vpack.c.b16 %v307, %v305
      %v402 = vpack.c.b16 %v308, %v306
      %v403 = vpack.c.b16 %v311, %v309
      %v404 = vpack.c.b16 %v312, %v310
      %v405 = vpack.c.b16 %v315, %v313
      %v406 = vpack.c.b16 %v316, %v314
      %v407 = vpack.c.b16 %v319, %v317
      %v408 = vpack.c.b16 %v320, %v318
      %v409 = vpack.c.b16 %v323, %v321
      %v410 = vpack.c.b16 %v324, %v322
      %v411 = vpack.c.b16 %v327, %v325
      %v412 = vpack.c.b16 %v328, %v326
      %v413 = vpack.c.b16 %v331, %v329
      %v414 = vpack.c.b16 %v332, %v330
      %v415 = vpack.c.b16 %v335, %v333
      %v416 = vpack.c.b16 %v336, %v334
      %v417 = vpack.c.b16 %v339, %v337
      %v418 = vpack.c.b16 %v340, %v338
      %v419 = vpack.c.b16 %v343, %v341
      %v420 = vpack.c.b16 %v344, %v342
      %v421 = vpack.c.b16 %v347, %v345
      %v422 = vpack.c.b16 %v348, %v346
      %v423 = vpack.c.b16 %v351, %v349
      %v424 = vpack.c.b16 %v352, %v350
      %v425 = vpack.c.b16 %v355, %v353
      %v426 = vpack.c.b16 %v356, %v354
      %v427 = vpack.c.b16 %v359, %v357
      %v428 = vpack.c.b16 %v360, %v358
      %v429 = vpack.c.b16 %v363, %v361
      %v430 = vpack.c.b16 %v364, %v362
      %v431 = vpack.c.b16 %v367, %v365
      %v432 = vpack.c.b16 %v368, %v366
      %v433 = vpack.c.b16 %v371, %v369
      %v434 = vpack.c.b16 %v372, %v370
      %v435 = vpack.c.b16 %v375, %v373
      %v436 = vpack.c.b16 %v376, %v374
      %v437 = vpack.c.b16 %v379, %v377
      %v438 = vpack.c.b16 %v380, %v378
      %v439 = vpack.c.b16 %v383, %v381
      %v440 = vpack.c.b16 %v384, %v382
      %v441 = vpack.c.b16 %v387, %v385
      %v442 = vpack.c.b16 %v388, %v386
      %v443 = vpack.c.b16 %v391, %v389
      %v444 = vpack.c.b16 %v392, %v390
      %v445 = vpack.c.b16 %v395, %v393
      %v446 = vpack.c.b16 %v396, %v394
      %v447 = vpack.c.b16 %v399, %v397
      %v448 = vpack.c.b16 %v400, %v398
      %497 = vmatprep.subr.bf16.mxu0 %v402
      %498 = vmatpush1.bf16.msra.mxu0 %v401
      %499 = vmatprep.subr.bf16.mxu0 %v404
      %500 = vmatpush1.bf16.msra.mxu0 %v403
      %501 = vmatprep.subr.bf16.mxu0 %v406
      %502 = vmatpush1.bf16.msra.mxu0 %v405
      %503 = vmatprep.subr.bf16.mxu0 %v408
      %504 = vmatpush1.bf16.msra.mxu0 %v407
      %505 = vmatprep.subr.bf16.mxu0 %v410
      %506 = vmatpush1.bf16.msra.mxu0 %v409
      %507 = vmatprep.subr.bf16.mxu0 %v412
      %508 = vmatpush1.bf16.msra.mxu0 %v411
      %509 = vmatprep.subr.bf16.mxu0 %v414
      %510 = vmatpush1.bf16.msra.mxu0 %v413
      %511 = vmatprep.subr.bf16.mxu0 %v416
      %512 = vmatpush1.bf16.msra.mxu0 %v415
      %513 = vmatprep.subr.bf16.mxu0 %v418
      %514 = vmatpush1.bf16.msra.mxu0 %v417
      %515 = vmatprep.subr.bf16.mxu0 %v420
      %516 = vmatpush1.bf16.msra.mxu0 %v419
      %517 = vmatprep.subr.bf16.mxu0 %v422
      %518 = vmatpush1.bf16.msra.mxu0 %v421
      %519 = vmatprep.subr.bf16.mxu0 %v424
      %520 = vmatpush1.bf16.msra.mxu0 %v423
      %521 = vmatprep.subr.bf16.mxu0 %v426
      %522 = vmatpush1.bf16.msra.mxu0 %v425
      %523 = vmatprep.subr.bf16.mxu0 %v428
      %524 = vmatpush1.bf16.msra.mxu0 %v427
      %525 = vmatprep.subr.bf16.mxu0 %v430
      %526 = vmatpush1.bf16.msra.mxu0 %v429
      %527 = vmatprep.subr.bf16.mxu0 %v432
      %528 = vmatpush1.bf16.msra.mxu0 %v431
      %529 = vmatprep.mubr.bf16.mxu0 %v252
      %530 = vmatmul.mubr.bf16.gmra.mrb[0].mxu0 %v251
      %v531 = vpop.f32.mrb[0].mxu0
      %v532 = vadd.f32 0.0, %v531
      %v533 = vpop.f32.mrb[0].mxu0
      %v534 = vadd.f32 0.0, %v533
      %v535 = vpop.f32.mrb[0].mxu0
      %v536 = vadd.f32 0.0, %v535
      %v537 = vpop.f32.mrb[0].mxu0
      %v538 = vadd.f32 0.0, %v537
      %539 = vdwg.mxu0
      %540 = vmatprep.subr.bf16.mxu0 %v434
      %541 = vmatpush1.bf16.msra.mxu0 %v433
      %542 = vmatprep.subr.bf16.mxu0 %v436
      %543 = vmatpush1.bf16.msra.mxu0 %v435
      %544 = vmatprep.subr.bf16.mxu0 %v438
      %545 = vmatpush1.bf16.msra.mxu0 %v437
      %546 = vmatprep.subr.bf16.mxu0 %v440
      %547 = vmatpush1.bf16.msra.mxu0 %v439
      %548 = vmatprep.subr.bf16.mxu0 %v442
      %549 = vmatpush1.bf16.msra.mxu0 %v441
      %550 = vmatprep.subr.bf16.mxu0 %v444
      %551 = vmatpush1.bf16.msra.mxu0 %v443
      %552 = vmatprep.subr.bf16.mxu0 %v446
      %553 = vmatpush1.bf16.msra.mxu0 %v445
      %554 = vmatprep.subr.bf16.mxu0 %v448
      %555 = vmatpush1.bf16.msra.mxu0 %v447
      %556 = vmatprep.subr.bf16.mxu0 0
      %557 = vmatpush1.bf16.msra.mxu0 0
      %558 = vmatprep.subr.bf16.mxu0 0
      %559 = vmatpush1.bf16.msra.mxu0 0
      %560 = vmatprep.subr.bf16.mxu0 0
      %561 = vmatpush1.bf16.msra.mxu0 0
      %562 = vmatprep.subr.bf16.mxu0 0
      %563 = vmatpush1.bf16.msra.mxu0 0
      %564 = vmatprep.subr.bf16.mxu0 0
      %565 = vmatpush1.bf16.msra.mxu0 0
      %566 = vmatprep.subr.bf16.mxu0 0
      %567 = vmatpush1.bf16.msra.mxu0 0
      %568 = vmatprep.subr.bf16.mxu0 0
      %569 = vmatpush1.bf16.msra.mxu0 0
      %570 = vmatprep.subr.bf16.mxu0 0
      %571 = vmatpush1.bf16.msra.mxu0 0
      %572 = vmatprep.mubr.bf16.mxu0 0
      %573 = vmatmul.mubr.bf16.gmra.mrb[0].mxu0 %v253
      %v574 = vpop.f32.mrb[0].mxu0
      %v575 = vadd.f32 %v532, %v574
      %v576 = vpop.f32.mrb[0].mxu0
      %v577 = vadd.f32 %v534, %v576
      %v578 = vpop.f32.mrb[0].mxu0
      %v579 = vadd.f32 %v536, %v578
      %v580 = vpop.f32.mrb[0].mxu0
      %v581 = vadd.f32 %v538, %v580
      %582 = vdwg.mxu0
      %583 = vst [vmem:[%s186] sm:$0xff] %v575
      %584 = vst [vmem:[%s186 + $0x8] sm:$0xff] %v577
      %585 = vst [vmem:[%s186 + $0x10] sm:$0xff] %v579
      %586 = vst [vmem:[%s186 + $0x18] sm:$0xff] %v581
      %s587 = smul.u32 2, %s18
      %p588 = scmp.lt.s32.totalorder %s17, 1
      %s589 = scalar_select %p588, %s17, 1
      %p590 = scmp.lt.s32.totalorder %s587, 1
      %s591 = scalar_select %p590, %s587, 1
      %s592 = smul.addr %s591, 2
      %s593 = smul.addr %s589, 4
      %s594 = sadd.s32 %s592, %s593
      %s595 = smul.addr %s594, 8
      %s596 = scalar_lea.vmem %s2, %s595
      // Predicated region
      $region29: #{upsample_forward.1} parent=27 // pred_check
        %p597 = pneg %p94
      $region30: #{upsample_forward.1} parent=27 // pred_check_branch
        %599 = sbr.rel (%p597) target = $region32
      $region31: #{upsample_forward.1} parent=27 // pred_region
        %s600 = smul.u32 2, %s18
      $region32: #{upsample_forward.1} parent=27 // pred_fallthru
        _
    $region28: #{upsample_forward.1} parent=5 // pred_fallthru
      _
    %p601 = scmp.le.s32.totalorder 2, %s8
    // Predicated region
    $region33: #{upsample_forward.1} parent=5 // pred_check
      %p602 = pneg %p601
    $region34: #{upsample_forward.1} parent=5 // pred_check_branch
      %604 = sbr.rel (%p602) target = $region36
    $region35: #{upsample_forward.1} parent=5 // pred_region
      %s605 = ssub.s32 %s8, 2
      // Predicated region
      $region37: #{upsample_forward.1} parent=35 // pred_check
        %p606 = pneg %p100
      $region38: #{upsample_forward.1} parent=35 // pred_check_branch
        %608 = sbr.rel (%p606) target = $region40
      $region39: #{upsample_forward.1} parent=35 // pred_region
        %s609 = smul.u32 2, %s20
        %p610 = scmp.lt.s32.totalorder %s19, 1
        %s611 = scalar_select %p610, %s19, 1
        %p612 = scmp.lt.s32.totalorder %s609, 1
        %s613 = scalar_select %p612, %s609, 1
        %s614 = smul.addr %s613, 2
        %s615 = smul.addr %s611, 4
        %s616 = sadd.s32 %s614, %s615
        %s617 = smul.addr %s616, 8
        %s618 = scalar_lea.vmem %s2, %s617
      $region40: #{upsample_forward.1} parent=35 // pred_fallthru
        _
    $region36: #{upsample_forward.1} parent=5 // pred_fallthru
      _
  $region6: #{upsample_forward.1} parent=0 // loop_footer
    %s12 = sadd.s32 1, %s8
  $region7: #{upsample_forward.1} parent=0 // loop_footer_branch
    %7 = sbr.rel target = $region3
  $region8: #{upsample_forward.1} parent=0 // loop_exit
    _

</llo_original>
